<compile_context>
chip_gen: v7x
topology: tpu7x:2x2x1
jax: 0.10.0
libtpu: 0.0.40
codegen_flags: <defaults>
</compile_context>

<pallas_src>
import jax
import jax.numpy as jnp
import numpy as np
from jax.experimental import pallas as pl
from jax.experimental.pallas import tpu as pltpu

SLOPE = 0.01                     # DepthConv default LeakyReLU negative_slope
_VPU_DOT_MAX_K = 8               # contraction dims <= this use VPU broadcast-FMA, not MXU
_VMEM_LIMIT_BYTES = 48 * 1024 * 1024


def _round_up(x, m):
    return ((x + m - 1) // m) * m


def _pick_tile_h(H, Wp, tile_h):
    if tile_h is not None:
        return max(1, min(tile_h, H))
    # target ~2k output lanes per channel per grid step (keeps intermediates in vregs /
    # small scratch on v5e, and per-step footprint far under v7x's 64 MiB VMEM)
    return max(1, min(H, 2048 // Wp if Wp < 2048 else 1))


def _make_depthconv_kernel(Wp, dw, dw_pad, out_n, has_adaptor):
    def dot_f32(w, x):
        # (R, C) @ (C, L) -> (R, L) f32 accumulate.
        # Tiny contraction dim -> unrolled VPU broadcast-FMA; otherwise MXU dot.
        _, c_dim = w.shape
        if c_dim <= _VPU_DOT_MAX_K:
            wf = w.astype(jnp.float32)
            xf = x.astype(jnp.float32)
            acc = wf[:, 0:1] * xf[0:1, :]
            for c in range(1, c_dim):
                acc = acc + wf[:, c:c + 1] * xf[c:c + 1, :]
            return acc
        return jnp.dot(w, x.astype(w.dtype), preferred_element_type=jnp.float32)

    def kernel(x_ref, m_ref, wc_ref, bc_ref, wd_ref, bd_ref, w2_ref, b2_ref, o_ref):
        xp = x_ref[0]                                             # (Cin, PAD_LEN)

        # conv1 (1x1) [+ fused adaptor rows] over the whole padded tile:
        # a single streaming pass over xp, f32 accumulation.
        z = dot_f32(wc_ref[...], xp) + bc_ref[...]                # (dw_pad[+Cout], PAD_LEN)

        # LeakyReLU, then re-zero the padding lanes so the depthwise conv sees true zeros.
        y1 = z[:dw, :] if has_adaptor else z
        y1 = jnp.where(y1 > 0, y1, SLOPE * y1) * m_ref[...]       # (dw, PAD_LEN) f32

        # depthwise 3x3 (pad 1): 9 per-channel-scaled shifted adds (pure VPU work).
        # Row windows hoisted; the kw = 0/1/2 shifts reuse resident data.
        acc = None
        for kh in range(3):
            row = y1[:, kh * Wp: kh * Wp + out_n + 2]             # (dw, out_n + 2)
            for kw in range(3):
                term = wd_ref[kh * 3 + kw] * row[:, kw:kw + out_n]
                acc = term if acc is None else acc + term
        y2 = acc + bd_ref[...]                                    # (dw, out_n) f32

        # conv2 (1x1, dw -> Cout)
        y3 = dot_f32(w2_ref[...], y2) + b2_ref[...]               # (Cout, out_n) f32

        # identity branch at the center-tap offset of the padded tile
        if has_adaptor:
            ident = z[dw_pad:, Wp + 1: Wp + 1 + out_n]            # fused adaptor rows
        else:
            ident = xp[:, Wp + 1: Wp + 1 + out_n].astype(jnp.float32)

        o_ref[0] = (y3 + ident).astype(o_ref.dtype)

    return kernel


def depthconv_forward(x_nchw, params, *, storage_dtype=jnp.bfloat16, tile_h=None):
    """Forward pass matching PyTorch DepthConv (stride=1). NCHW in, NCHW (f32) out."""
    B, Cin, H, W = x_nchw.shape
    dw = Cin
    Cout = params["w2"].shape[0]
    has_adaptor = params.get("wa") is not None

    Wp = W + 2                                       # padded ("wide") row length
    TH = _pick_tile_h(H, Wp, tile_h)                 # output rows per grid step
    n_tiles = pl.cdiv(H, TH)
    Ht = n_tiles * TH                                # H rounded up to a tile multiple
    tile_rows = TH + 2                               # input rows per tile (2-row halo)
    tile_len = tile_rows * Wp                        # valid flattened lanes per input tile
    TILE_N = TH * Wp                                 # wide output lanes per tile
    OUT_N = _round_up(TILE_N, 128)                   # lane-dense output block width
    PAD_LEN = _round_up(2 * Wp + OUT_N + 2, 128)     # >= tile_len, covers max tap slice

    f32 = jnp.float32

    # --- glue: zero-pad H/W by 1 (plus Ht-H bottom rows), flatten, cut halo'd tiles ---
    xpad = jnp.pad(x_nchw.astype(storage_dtype),
                   ((0, 0), (0, 0), (1, 1 + Ht - H), (1, 1)))     # (B, Cin, Ht+2, Wp)
    xflat = xpad.reshape(B, Cin, (Ht + 2) * Wp)
    tiles = [
        jnp.pad(xflat[:, :, t * TH * Wp: t * TH * Wp + tile_len],
                ((0, 0), (0, 0), (0, PAD_LEN - tile_len)))
        for t in range(n_tiles)
    ]
    x_tiles = tiles[0] if n_tiles == 1 else jnp.concatenate(tiles, axis=-1)

    # per-tile 0/1 interior mask over the flattened padded lanes (host precomputed)
    lanes = np.arange(PAD_LEN)
    r_loc, c_loc = np.divmod(lanes, Wp)
    mrows = []
    for t in range(n_tiles):
        r_glob = t * TH + r_loc
        mrows.append(((lanes < tile_len) & (r_glob >= 1) & (r_glob <= H)
                      & (c_loc >= 1) & (c_loc <= W)).astype(np.float32))
    mask = jnp.asarray(np.concatenate(mrows)[None, :])            # (1, n_tiles*PAD_LEN)

    # --- glue: weights in channels-leading layout; adaptor fused into conv1 ---
    w1 = params["w1"][:, :, 0, 0].astype(f32)                     # (dw, Cin)
    b1 = params["b1"].reshape(dw, 1).astype(f32)
    dw_pad = _round_up(dw, 8)                                     # sublane-align adaptor rows
    if has_adaptor:
        zpad_w = jnp.zeros((dw_pad - dw, Cin), f32)
        zpad_b = jnp.zeros((dw_pad - dw, 1), f32)
        wcat = jnp.concatenate([w1, zpad_w, params["wa"][:, :, 0, 0].astype(f32)], axis=0)
        bcat = jnp.concatenate([b1, zpad_b, params["ba"].reshape(Cout, 1).astype(f32)], axis=0)
    else:
        wcat, bcat = w1, b1
    wcat = wcat.astype(storage_dtype)
    R1 = wcat.shape[0]
    wd = params["wd"].reshape(dw, 9).T.reshape(9, dw, 1).astype(f32)   # (9, dw, 1)
    bd = params["bd"].reshape(dw, 1).astype(f32)
    w2 = params["w2"][:, :, 0, 0].astype(storage_dtype)                # (Cout, dw)
    b2 = params["b2"].reshape(Cout, 1).astype(f32)

    kernel = _make_depthconv_kernel(Wp, dw, dw_pad, OUT_N, has_adaptor)

    out = pl.pallas_call(
        kernel,
        out_shape=jax.ShapeDtypeStruct((B, Cout, n_tiles * OUT_N), f32),
        grid=(B, n_tiles),
        in_specs=[
            pl.BlockSpec((1, Cin, PAD_LEN), lambda b, t: (b, 0, t)),
            pl.BlockSpec((1, PAD_LEN), lambda b, t: (0, t)),
            pl.BlockSpec((R1, Cin), lambda b, t: (0, 0)),
            pl.BlockSpec((R1, 1), lambda b, t: (0, 0)),
            pl.BlockSpec((9, dw, 1), lambda b, t: (0, 0, 0)),
            pl.BlockSpec((dw, 1), lambda b, t: (0, 0)),
            pl.BlockSpec((Cout, dw), lambda b, t: (0, 0)),
            pl.BlockSpec((Cout, 1), lambda b, t: (0, 0)),
        ],
        out_specs=pl.BlockSpec((1, Cout, OUT_N), lambda b, t: (b, 0, t)),
        compiler_params=pltpu.CompilerParams(
            dimension_semantics=("parallel", "parallel"),
            vmem_limit_bytes=_VMEM_LIMIT_BYTES),
    )(x_tiles, mask, wcat, bcat, wd, bd, w2, b2)

    # --- glue: drop lane padding + wrap columns + bottom tile padding; already NCHW ---
    out = out.reshape(B, Cout, n_tiles, OUT_N)[:, :, :, :TILE_N]
    return out.reshape(B, Cout, Ht, Wp)[:, :, :H, :W]


def depthconv_reference(x, params):
    """Pure-JAX f32 reference mirroring the PyTorch DepthConv forward."""
    def conv1x1(inp, w, b):
        y = jax.lax.conv_general_dilated(
            inp, w, window_strides=(1, 1), padding="VALID",
            dimension_numbers=("NCHW", "OIHW", "NCHW"))
        return y + b[None, :, None, None]

    lrelu = lambda t: jnp.where(t > 0, t, SLOPE * t)
    dw = params["wd"].shape[0]
    out = lrelu(conv1x1(x, params["w1"], params["b1"]))
    out = jax.lax.conv_general_dilated(
        out, params["wd"], window_strides=(1, 1), padding=[(1, 1), (1, 1)],
        dimension_numbers=("NCHW", "OIHW", "NCHW"),
        feature_group_count=dw) + params["bd"][None, :, None, None]
    out = conv1x1(out, params["w2"], params["b2"])
    if params.get("wa") is not None:
        ident = conv1x1(x, params["wa"], params["ba"])
    else:
        ident = x
    return out + ident


if __name__ == "__main__":
    B = 2

    def make_params(key, in_ch, out_ch):
        dw = in_ch
        k = jax.random.split(key, 9)
        p = {
            "w1": jax.random.normal(k[0], (dw, in_ch, 1, 1), jnp.float32) * 0.3,
            "b1": jax.random.normal(k[1], (dw,), jnp.float32) * 0.1,
            "wd": jax.random.normal(k[2], (dw, 1, 3, 3), jnp.float32) * 0.3,
            "bd": jax.random.normal(k[3], (dw,), jnp.float32) * 0.1,
            "w2": jax.random.normal(k[4], (out_ch, dw, 1, 1), jnp.float32) * 0.3,
            "b2": jax.random.normal(k[5], (out_ch,), jnp.float32) * 0.1,
            "wa": None, "ba": None,
        }
        if in_ch != out_ch:
            p["wa"] = jax.random.normal(k[6], (out_ch, in_ch, 1, 1), jnp.float32) * 0.3
            p["ba"] = jax.random.normal(k[7], (out_ch,), jnp.float32) * 0.1
        return p, k[8]

    # case 1: in_ch != out_ch (adaptor fused into conv1), f32 storage, VPU small-C path
    params_a, ka = make_params(jax.random.PRNGKey(0), 4, 8)
    x_a = jax.random.normal(ka, (B, 4, 16, 16), jnp.float32)
    out_a = jax.block_until_ready(
        depthconv_forward(x_a, params_a, storage_dtype=jnp.float32))
    ref_a = jax.block_until_ready(depthconv_reference(x_a, params_a))
    assert out_a.shape == (B, 8, 16, 16), out_a.shape
    np.testing.assert_allclose(np.asarray(out_a), np.asarray(ref_a), rtol=2e-3, atol=2e-3)

    # case 2: in_ch == out_ch (pure identity skip, direct add), f32 storage
    params_b, kb = make_params(jax.random.PRNGKey(1), 4, 4)
    x_b = jax.random.normal(kb, (B, 4, 16, 16), jnp.float32)
    out_b = jax.block_until_ready(
        depthconv_forward(x_b, params_b, storage_dtype=jnp.float32))
    ref_b = jax.block_until_ready(depthconv_reference(x_b, params_b))
    assert out_b.shape == (B, 4, 16, 16), out_b.shape
    np.testing.assert_allclose(np.asarray(out_b), np.asarray(ref_b), rtol=2e-3, atol=2e-3)

    # case 3: larger channels (MXU path), bf16 storage, H-tiled grid with a ragged
    # bottom tile (H=20, tile_h=8 -> 3 tiles, Ht=24 > H)
    params_c, kc = make_params(jax.random.PRNGKey(2), 16, 24)
    x_c = jax.random.normal(kc, (B, 16, 20, 20), jnp.float32)
    out_c = jax.block_until_ready(
        depthconv_forward(x_c, params_c, storage_dtype=jnp.bfloat16, tile_h=8))
    ref_c = jax.block_until_ready(depthconv_reference(x_c, params_c))
    assert out_c.shape == (B, 24, 20, 20), out_c.shape
    np.testing.assert_allclose(np.asarray(out_c), np.asarray(ref_c), rtol=5e-2, atol=5e-2)

    print("KERNEL_OK")
</pallas_src>

<mosaic_0001>
module attributes {stable_mosaic.version = 11 : i64} {
  func.func @kernel(%arg0: i32, %arg1: i32, %arg2: memref<1x4x512xf32, #tpu.memory_space<vmem>>, %arg3: memref<1x512xf32, #tpu.memory_space<vmem>>, %arg4: memref<16x4xf32, #tpu.memory_space<vmem>>, %arg5: memref<16x1xf32, #tpu.memory_space<vmem>>, %arg6: memref<9x4x1xf32, #tpu.memory_space<vmem>>, %arg7: memref<4x1xf32, #tpu.memory_space<vmem>>, %arg8: memref<8x4xf32, #tpu.memory_space<vmem>>, %arg9: memref<8x1xf32, #tpu.memory_space<vmem>>, %arg10: memref<1x8x384xf32, #tpu.memory_space<vmem>>) attributes {dimension_semantics = [#tpu.dimension_semantics<parallel>, #tpu.dimension_semantics<parallel>], iteration_bounds = array<i64: 2, 1>, scalar_prefetch = 0 : i64, scratch_operands = 0 : i64, tpu.core_type = #tpu.core_type<tc>, window_params = [{transform_indices = @transform_0, window_bounds = array<i64: 1, 4, 512>}, {transform_indices = @transform_1, window_bounds = array<i64: 1, 512>}, {pipeline_mode = #tpu.pipeline_mode<synchronous>, transform_indices = @transform_2, window_bounds = array<i64: 16, 4>}, {pipeline_mode = #tpu.pipeline_mode<synchronous>, transform_indices = @transform_3, window_bounds = array<i64: 16, 1>}, {pipeline_mode = #tpu.pipeline_mode<synchronous>, transform_indices = @transform_4, window_bounds = array<i64: 9, 4, 1>}, {pipeline_mode = #tpu.pipeline_mode<synchronous>, transform_indices = @transform_5, window_bounds = array<i64: 4, 1>}, {pipeline_mode = #tpu.pipeline_mode<synchronous>, transform_indices = @transform_6, window_bounds = array<i64: 8, 4>}, {pipeline_mode = #tpu.pipeline_mode<synchronous>, transform_indices = @transform_7, window_bounds = array<i64: 8, 1>}, {transform_indices = @transform_8, window_bounds = array<i64: 1, 8, 384>}]} {
    %c0 = arith.constant 0 : index
    %c0_0 = arith.constant 0 : index
    %c0_1 = arith.constant 0 : index
    %0 = vector.load %arg2[%c0, %c0_0, %c0_1] : memref<1x4x512xf32, #tpu.memory_space<vmem>>, vector<1x4x512xf32>
    %1 = vector.shape_cast %0 : vector<1x4x512xf32> to vector<4x512xf32>
    %c0_2 = arith.constant 0 : index
    %c0_3 = arith.constant 0 : index
    %2 = vector.load %arg4[%c0_2, %c0_3] : memref<16x4xf32, #tpu.memory_space<vmem>>, vector<16x4xf32>
    %3 = vector.extract_strided_slice %2 {offsets = [0, 0], sizes = [16, 1], strides = [1, 1]} : vector<16x4xf32> to vector<16x1xf32>
    %4 = vector.extract_strided_slice %1 {offsets = [0, 0], sizes = [1, 512], strides = [1, 1]} : vector<4x512xf32> to vector<1x512xf32>
    %5 = vector.broadcast %3 : vector<16x1xf32> to vector<16x512xf32>
    %6 = vector.broadcast %4 : vector<1x512xf32> to vector<16x512xf32>
    %7 = arith.mulf %5, %6 : vector<16x512xf32>
    %8 = vector.extract_strided_slice %2 {offsets = [0, 1], sizes = [16, 1], strides = [1, 1]} : vector<16x4xf32> to vector<16x1xf32>
    %9 = vector.extract_strided_slice %1 {offsets = [1, 0], sizes = [1, 512], strides = [1, 1]} : vector<4x512xf32> to vector<1x512xf32>
    %10 = vector.broadcast %8 : vector<16x1xf32> to vector<16x512xf32>
    %11 = vector.broadcast %9 : vector<1x512xf32> to vector<16x512xf32>
    %12 = arith.mulf %10, %11 : vector<16x512xf32>
    %13 = arith.addf %7, %12 : vector<16x512xf32>
    %14 = vector.extract_strided_slice %2 {offsets = [0, 2], sizes = [16, 1], strides = [1, 1]} : vector<16x4xf32> to vector<16x1xf32>
    %15 = vector.extract_strided_slice %1 {offsets = [2, 0], sizes = [1, 512], strides = [1, 1]} : vector<4x512xf32> to vector<1x512xf32>
    %16 = vector.broadcast %14 : vector<16x1xf32> to vector<16x512xf32>
    %17 = vector.broadcast %15 : vector<1x512xf32> to vector<16x512xf32>
    %18 = arith.mulf %16, %17 : vector<16x512xf32>
    %19 = arith.addf %13, %18 : vector<16x512xf32>
    %20 = vector.extract_strided_slice %2 {offsets = [0, 3], sizes = [16, 1], strides = [1, 1]} : vector<16x4xf32> to vector<16x1xf32>
    %21 = vector.extract_strided_slice %1 {offsets = [3, 0], sizes = [1, 512], strides = [1, 1]} : vector<4x512xf32> to vector<1x512xf32>
    %22 = vector.broadcast %20 : vector<16x1xf32> to vector<16x512xf32>
    %23 = vector.broadcast %21 : vector<1x512xf32> to vector<16x512xf32>
    %24 = arith.mulf %22, %23 : vector<16x512xf32>
    %25 = arith.addf %19, %24 : vector<16x512xf32>
    %c0_4 = arith.constant 0 : index
    %c0_5 = arith.constant 0 : index
    %26 = vector.load %arg5[%c0_4, %c0_5] : memref<16x1xf32, #tpu.memory_space<vmem>>, vector<16x1xf32>
    %27 = vector.broadcast %26 : vector<16x1xf32> to vector<16x512xf32>
    %28 = arith.addf %25, %27 : vector<16x512xf32>
    %29 = vector.extract_strided_slice %28 {offsets = [0, 0], sizes = [4, 512], strides = [1, 1]} : vector<16x512xf32> to vector<4x512xf32>
    %cst = arith.constant 0.000000e+00 : f32
    %30 = vector.broadcast %cst : f32 to vector<4x512xf32>
    %31 = arith.cmpf ogt, %29, %30 : vector<4x512xf32>
    %cst_6 = arith.constant 0.00999999977 : f32
    %32 = vector.broadcast %cst_6 : f32 to vector<4x512xf32>
    %33 = arith.mulf %32, %29 : vector<4x512xf32>
    %34 = arith.select %31, %29, %33 : vector<4x512xi1>, vector<4x512xf32>
    %c0_7 = arith.constant 0 : index
    %c0_8 = arith.constant 0 : index
    %35 = vector.load %arg3[%c0_7, %c0_8] : memref<1x512xf32, #tpu.memory_space<vmem>>, vector<1x512xf32>
    %36 = vector.broadcast %35 : vector<1x512xf32> to vector<4x512xf32>
    %37 = arith.mulf %34, %36 : vector<4x512xf32>
    %38 = vector.extract_strided_slice %37 {offsets = [0, 0], sizes = [4, 386], strides = [1, 1]} : vector<4x512xf32> to vector<4x386xf32>
    %c0_9 = arith.constant 0 : index
    %c0_10 = arith.constant 0 : index
    %c0_11 = arith.constant 0 : index
    %39 = vector.load %arg6[%c0_9, %c0_10, %c0_11] : memref<9x4x1xf32, #tpu.memory_space<vmem>>, vector<1x4x1xf32>
    %40 = vector.shape_cast %39 : vector<1x4x1xf32> to vector<4x1xf32>
    %41 = vector.extract_strided_slice %38 {offsets = [0, 0], sizes = [4, 384], strides = [1, 1]} : vector<4x386xf32> to vector<4x384xf32>
    %42 = vector.broadcast %40 : vector<4x1xf32> to vector<4x384xf32>
    %43 = arith.mulf %42, %41 : vector<4x384xf32>
    %c1 = arith.constant 1 : index
    %c0_12 = arith.constant 0 : index
    %c0_13 = arith.constant 0 : index
    %44 = vector.load %arg6[%c1, %c0_12, %c0_13] : memref<9x4x1xf32, #tpu.memory_space<vmem>>, vector<1x4x1xf32>
    %45 = vector.shape_cast %44 : vector<1x4x1xf32> to vector<4x1xf32>
    %46 = vector.extract_strided_slice %38 {offsets = [0, 1], sizes = [4, 384], strides = [1, 1]} : vector<4x386xf32> to vector<4x384xf32>
    %47 = vector.broadcast %45 : vector<4x1xf32> to vector<4x384xf32>
    %48 = arith.mulf %47, %46 : vector<4x384xf32>
    %49 = arith.addf %43, %48 : vector<4x384xf32>
    %c2 = arith.constant 2 : index
    %c0_14 = arith.constant 0 : index
    %c0_15 = arith.constant 0 : index
    %50 = vector.load %arg6[%c2, %c0_14, %c0_15] : memref<9x4x1xf32, #tpu.memory_space<vmem>>, vector<1x4x1xf32>
    %51 = vector.shape_cast %50 : vector<1x4x1xf32> to vector<4x1xf32>
    %52 = vector.extract_strided_slice %38 {offsets = [0, 2], sizes = [4, 384], strides = [1, 1]} : vector<4x386xf32> to vector<4x384xf32>
    %53 = vector.broadcast %51 : vector<4x1xf32> to vector<4x384xf32>
    %54 = arith.mulf %53, %52 : vector<4x384xf32>
    %55 = arith.addf %49, %54 : vector<4x384xf32>
    %56 = vector.extract_strided_slice %37 {offsets = [0, 18], sizes = [4, 386], strides = [1, 1]} : vector<4x512xf32> to vector<4x386xf32>
    %c3 = arith.constant 3 : index
    %c0_16 = arith.constant 0 : index
    %c0_17 = arith.constant 0 : index
    %57 = vector.load %arg6[%c3, %c0_16, %c0_17] : memref<9x4x1xf32, #tpu.memory_space<vmem>>, vector<1x4x1xf32>
    %58 = vector.shape_cast %57 : vector<1x4x1xf32> to vector<4x1xf32>
    %59 = vector.extract_strided_slice %56 {offsets = [0, 0], sizes = [4, 384], strides = [1, 1]} : vector<4x386xf32> to vector<4x384xf32>
    %60 = vector.broadcast %58 : vector<4x1xf32> to vector<4x384xf32>
    %61 = arith.mulf %60, %59 : vector<4x384xf32>
    %62 = arith.addf %55, %61 : vector<4x384xf32>
    %c4 = arith.constant 4 : index
    %c0_18 = arith.constant 0 : index
    %c0_19 = arith.constant 0 : index
    %63 = vector.load %arg6[%c4, %c0_18, %c0_19] : memref<9x4x1xf32, #tpu.memory_space<vmem>>, vector<1x4x1xf32>
    %64 = vector.shape_cast %63 : vector<1x4x1xf32> to vector<4x1xf32>
    %65 = vector.extract_strided_slice %56 {offsets = [0, 1], sizes = [4, 384], strides = [1, 1]} : vector<4x386xf32> to vector<4x384xf32>
    %66 = vector.broadcast %64 : vector<4x1xf32> to vector<4x384xf32>
    %67 = arith.mulf %66, %65 : vector<4x384xf32>
    %68 = arith.addf %62, %67 : vector<4x384xf32>
    %c5 = arith.constant 5 : index
    %c0_20 = arith.constant 0 : index
    %c0_21 = arith.constant 0 : index
    %69 = vector.load %arg6[%c5, %c0_20, %c0_21] : memref<9x4x1xf32, #tpu.memory_space<vmem>>, vector<1x4x1xf32>
    %70 = vector.shape_cast %69 : vector<1x4x1xf32> to vector<4x1xf32>
    %71 = vector.extract_strided_slice %56 {offsets = [0, 2], sizes = [4, 384], strides = [1, 1]} : vector<4x386xf32> to vector<4x384xf32>
    %72 = vector.broadcast %70 : vector<4x1xf32> to vector<4x384xf32>
    %73 = arith.mulf %72, %71 : vector<4x384xf32>
    %74 = arith.addf %68, %73 : vector<4x384xf32>
    %75 = vector.extract_strided_slice %37 {offsets = [0, 36], sizes = [4, 386], strides = [1, 1]} : vector<4x512xf32> to vector<4x386xf32>
    %c6 = arith.constant 6 : index
    %c0_22 = arith.constant 0 : index
    %c0_23 = arith.constant 0 : index
    %76 = vector.load %arg6[%c6, %c0_22, %c0_23] : memref<9x4x1xf32, #tpu.memory_space<vmem>>, vector<1x4x1xf32>
    %77 = vector.shape_cast %76 : vector<1x4x1xf32> to vector<4x1xf32>
    %78 = vector.extract_strided_slice %75 {offsets = [0, 0], sizes = [4, 384], strides = [1, 1]} : vector<4x386xf32> to vector<4x384xf32>
    %79 = vector.broadcast %77 : vector<4x1xf32> to vector<4x384xf32>
    %80 = arith.mulf %79, %78 : vector<4x384xf32>
    %81 = arith.addf %74, %80 : vector<4x384xf32>
    %c7 = arith.constant 7 : index
    %c0_24 = arith.constant 0 : index
    %c0_25 = arith.constant 0 : index
    %82 = vector.load %arg6[%c7, %c0_24, %c0_25] : memref<9x4x1xf32, #tpu.memory_space<vmem>>, vector<1x4x1xf32>
    %83 = vector.shape_cast %82 : vector<1x4x1xf32> to vector<4x1xf32>
    %84 = vector.extract_strided_slice %75 {offsets = [0, 1], sizes = [4, 384], strides = [1, 1]} : vector<4x386xf32> to vector<4x384xf32>
    %85 = vector.broadcast %83 : vector<4x1xf32> to vector<4x384xf32>
    %86 = arith.mulf %85, %84 : vector<4x384xf32>
    %87 = arith.addf %81, %86 : vector<4x384xf32>
    %c8 = arith.constant 8 : index
    %c0_26 = arith.constant 0 : index
    %c0_27 = arith.constant 0 : index
    %88 = vector.load %arg6[%c8, %c0_26, %c0_27] : memref<9x4x1xf32, #tpu.memory_space<vmem>>, vector<1x4x1xf32>
    %89 = vector.shape_cast %88 : vector<1x4x1xf32> to vector<4x1xf32>
    %90 = vector.extract_strided_slice %75 {offsets = [0, 2], sizes = [4, 384], strides = [1, 1]} : vector<4x386xf32> to vector<4x384xf32>
    %91 = vector.broadcast %89 : vector<4x1xf32> to vector<4x384xf32>
    %92 = arith.mulf %91, %90 : vector<4x384xf32>
    %93 = arith.addf %87, %92 : vector<4x384xf32>
    %c0_28 = arith.constant 0 : index
    %c0_29 = arith.constant 0 : index
    %94 = vector.load %arg7[%c0_28, %c0_29] : memref<4x1xf32, #tpu.memory_space<vmem>>, vector<4x1xf32>
    %95 = vector.broadcast %94 : vector<4x1xf32> to vector<4x384xf32>
    %96 = arith.addf %93, %95 : vector<4x384xf32>
    %c0_30 = arith.constant 0 : index
    %c0_31 = arith.constant 0 : index
    %97 = vector.load %arg8[%c0_30, %c0_31] : memref<8x4xf32, #tpu.memory_space<vmem>>, vector<8x4xf32>
    %98 = vector.extract_strided_slice %97 {offsets = [0, 0], sizes = [8, 1], strides = [1, 1]} : vector<8x4xf32> to vector<8x1xf32>
    %99 = vector.extract_strided_slice %96 {offsets = [0, 0], sizes = [1, 384], strides = [1, 1]} : vector<4x384xf32> to vector<1x384xf32>
    %100 = vector.broadcast %98 : vector<8x1xf32> to vector<8x384xf32>
    %101 = vector.broadcast %99 : vector<1x384xf32> to vector<8x384xf32>
    %102 = arith.mulf %100, %101 : vector<8x384xf32>
    %103 = vector.extract_strided_slice %97 {offsets = [0, 1], sizes = [8, 1], strides = [1, 1]} : vector<8x4xf32> to vector<8x1xf32>
    %104 = vector.extract_strided_slice %96 {offsets = [1, 0], sizes = [1, 384], strides = [1, 1]} : vector<4x384xf32> to vector<1x384xf32>
    %105 = vector.broadcast %103 : vector<8x1xf32> to vector<8x384xf32>
    %106 = vector.broadcast %104 : vector<1x384xf32> to vector<8x384xf32>
    %107 = arith.mulf %105, %106 : vector<8x384xf32>
    %108 = arith.addf %102, %107 : vector<8x384xf32>
    %109 = vector.extract_strided_slice %97 {offsets = [0, 2], sizes = [8, 1], strides = [1, 1]} : vector<8x4xf32> to vector<8x1xf32>
    %110 = vector.extract_strided_slice %96 {offsets = [2, 0], sizes = [1, 384], strides = [1, 1]} : vector<4x384xf32> to vector<1x384xf32>
    %111 = vector.broadcast %109 : vector<8x1xf32> to vector<8x384xf32>
    %112 = vector.broadcast %110 : vector<1x384xf32> to vector<8x384xf32>
    %113 = arith.mulf %111, %112 : vector<8x384xf32>
    %114 = arith.addf %108, %113 : vector<8x384xf32>
    %115 = vector.extract_strided_slice %97 {offsets = [0, 3], sizes = [8, 1], strides = [1, 1]} : vector<8x4xf32> to vector<8x1xf32>
    %116 = vector.extract_strided_slice %96 {offsets = [3, 0], sizes = [1, 384], strides = [1, 1]} : vector<4x384xf32> to vector<1x384xf32>
    %117 = vector.broadcast %115 : vector<8x1xf32> to vector<8x384xf32>
    %118 = vector.broadcast %116 : vector<1x384xf32> to vector<8x384xf32>
    %119 = arith.mulf %117, %118 : vector<8x384xf32>
    %120 = arith.addf %114, %119 : vector<8x384xf32>
    %c0_32 = arith.constant 0 : index
    %c0_33 = arith.constant 0 : index
    %121 = vector.load %arg9[%c0_32, %c0_33] : memref<8x1xf32, #tpu.memory_space<vmem>>, vector<8x1xf32>
    %122 = vector.broadcast %121 : vector<8x1xf32> to vector<8x384xf32>
    %123 = arith.addf %120, %122 : vector<8x384xf32>
    %124 = vector.extract_strided_slice %28 {offsets = [8, 19], sizes = [8, 384], strides = [1, 1]} : vector<16x512xf32> to vector<8x384xf32>
    %125 = arith.addf %123, %124 : vector<8x384xf32>
    %c0_34 = arith.constant 0 : index
    %c0_35 = arith.constant 0 : index
    %c0_36 = arith.constant 0 : index
    %126 = vector.load %arg10[%c0_34, %c0_35, %c0_36] : memref<1x8x384xf32, #tpu.memory_space<vmem>>, vector<1x8x384xf32>
    %127 = vector.shape_cast %126 : vector<1x8x384xf32> to vector<8x384xf32>
    %128 = vector.shape_cast %125 : vector<8x384xf32> to vector<1x8x384xf32>
    tpu.vector_store %arg10[%c0_34, %c0_35, %c0_36], %128 {strides = array<i32>} : memref<1x8x384xf32, #tpu.memory_space<vmem>>, vector<1x8x384xf32>,
    return
  }
  func.func @transform_0(%arg0: i32, %arg1: i32) -> (i32, i32, i32) {
    %c0_i32 = arith.constant 0 : i32
    %c0_i32_0 = arith.constant 0 : i32
    return %arg0, %c0_i32, %arg1 : i32, i32, i32
  }
  func.func @transform_1(%arg0: i32, %arg1: i32) -> (i32, i32) {
    %c0_i32 = arith.constant 0 : i32
    %c0_i32_0 = arith.constant 0 : i32
    return %c0_i32, %arg1 : i32, i32
  }
  func.func @transform_2(%arg0: i32, %arg1: i32) -> (i32, i32) {
    %c0_i32 = arith.constant 0 : i32
    %c0_i32_0 = arith.constant 0 : i32
    %c0_i32_1 = arith.constant 0 : i32
    return %c0_i32, %c0_i32_0 : i32, i32
  }
  func.func @transform_3(%arg0: i32, %arg1: i32) -> (i32, i32) {
    %c0_i32 = arith.constant 0 : i32
    %c0_i32_0 = arith.constant 0 : i32
    %c0_i32_1 = arith.constant 0 : i32
    return %c0_i32, %c0_i32_0 : i32, i32
  }
  func.func @transform_4(%arg0: i32, %arg1: i32) -> (i32, i32, i32) {
    %c0_i32 = arith.constant 0 : i32
    %c0_i32_0 = arith.constant 0 : i32
    %c0_i32_1 = arith.constant 0 : i32
    %c0_i32_2 = arith.constant 0 : i32
    return %c0_i32, %c0_i32_0, %c0_i32_1 : i32, i32, i32
  }
  func.func @transform_5(%arg0: i32, %arg1: i32) -> (i32, i32) {
    %c0_i32 = arith.constant 0 : i32
    %c0_i32_0 = arith.constant 0 : i32
    %c0_i32_1 = arith.constant 0 : i32
    return %c0_i32, %c0_i32_0 : i32, i32
  }
  func.func @transform_6(%arg0: i32, %arg1: i32) -> (i32, i32) {
    %c0_i32 = arith.constant 0 : i32
    %c0_i32_0 = arith.constant 0 : i32
    %c0_i32_1 = arith.constant 0 : i32
    return %c0_i32, %c0_i32_0 : i32, i32
  }
  func.func @transform_7(%arg0: i32, %arg1: i32) -> (i32, i32) {
    %c0_i32 = arith.constant 0 : i32
    %c0_i32_0 = arith.constant 0 : i32
    %c0_i32_1 = arith.constant 0 : i32
    return %c0_i32, %c0_i32_0 : i32, i32
  }
  func.func @transform_8(%arg0: i32, %arg1: i32) -> (i32, i32, i32) {
    %c0_i32 = arith.constant 0 : i32
    %c0_i32_0 = arith.constant 0 : i32
    return %arg0, %c0_i32, %arg1 : i32, i32, i32
  }
}

</mosaic_0001>

<llo_original>
// kernel: tpu_custom_call.1
$region0: #{tpu_custom_call.1}
  #allocation0 [shape = 'u32[]', space=smem, size = 0x4, offset = 0x4, fixed_abs, tag = 'smem constant byte address 0x4 - core index']
  #allocation1 [shape = 'u32[144,128]{1,0:T(1,128)}', space=vmem, size = 0x12000, scoped, tag = 'internal scratch']
  %s0 = inlined_call_operand.vmem [shape: f32[2,4,512], index: 0, kind: input, shape index: {}]
  %s1 = inlined_call_operand.vmem [shape: f32[1,512], index: 1, kind: input, shape index: {}]
  %s2 = inlined_call_operand.vmem [shape: f32[16,4], index: 2, kind: input, shape index: {}]
  %s3 = inlined_call_operand.vmem [shape: f32[16,1], index: 3, kind: input, shape index: {}]
  %s4 = inlined_call_operand.vmem [shape: f32[9,4,1], index: 4, kind: input, shape index: {}]
  %s5 = inlined_call_operand.vmem [shape: f32[4,1], index: 5, kind: input, shape index: {}]
  %s6 = inlined_call_operand.vmem [shape: f32[8,4], index: 6, kind: input, shape index: {}]
  %s7 = inlined_call_operand.vmem [shape: f32[8,1], index: 7, kind: input, shape index: {}]
  %s8 = inlined_call_operand.hbm [shape: f32[2,8,384], index: 8, kind: output, shape index: {}]
  %s9 = sld [smem:[#allocation0]]
  $region65: #{tpu_custom_call.1} parent=0
    _
  %s11 = ssub.s32 1, %s9
  %s12 = scalar_select 0, %s11, %s9
  $region1: #{tpu_custom_call.1} parent=0
    #allocation2 [shape = 'u8[24576]{0}', space=vmem, size = 0x6000, scoped, tag = 'output window, operand 0']
    #allocation3 [shape = 's32[2]{0}', space=sflag, size = 0x8, scoped, tag = 'scoped memory for tpu_custom_call.1']
    %13 = vsyncpa [#allocation3], 0
    %s14 = scalar_lea.sflag [#allocation3], 1
    %15 = vsyncpa %s14, 0
    loop: start=0, step=1, limit=4
    $region2: #{tpu_custom_call.1} parent=1 // loop_pre_header
      _
    $region3: #{tpu_custom_call.1} parent=1 // loop_header
      %s17 = sphi 0, %s21
      %p18 = scmp.ge.s32.totalorder %s17, 4
      %s24 = sphi 0, %s36
      %s25 = sphi 0, %s32
      %s26 = sphi 0, %s24
      %s27 = sphi 0, %s25
      %s28 = sphi 0, %s26
      %s29 = sphi 0, %s27
      %s41 = sphi 0, %s43
      %s44 = sphi 0, %s41
      %s45 = sphi 0, %s44
      %s61 = sphi 0, %s45
      %s67 = sphi 0, %s69
      %s70 = sphi 0, %s67
      %s71 = sphi 0, %s70
      %s87 = sphi 0, %s71
      %s91 = sphi 0, %s91
      %s93 = sphi 0, %s91
      %s94 = sphi 0, %s93
      %s108 = sphi 0, %s94
      %s112 = sphi 0, %s112
      %s114 = sphi 0, %s112
      %s115 = sphi 0, %s114
      %s129 = sphi 0, %s115
      %s133 = sphi 0, %s133
      %s135 = sphi 0, %s133
      %s136 = sphi 0, %s135
      %s150 = sphi 0, %s136
      %s154 = sphi 0, %s154
      %s156 = sphi 0, %s154
      %s157 = sphi 0, %s156
      %s171 = sphi 0, %s157
      %s175 = sphi 0, %s175
      %s177 = sphi 0, %s175
      %s178 = sphi 0, %s177
      %s192 = sphi 0, %s178
      %s196 = sphi 0, %s196
      %s198 = sphi 0, %s196
      %s199 = sphi 0, %s198
      %s213 = sphi 0, %s199
      %s221 = sphi 0, %s223
      %s224 = sphi 0, %s221
      %s225 = sphi 0, %s224
      %s241 = sphi 0, %s225
    $region4: #{tpu_custom_call.1} parent=1 // loop_header_branch
      %20 = sbr.rel (%p18) target = $region8
    $region5: #{tpu_custom_call.1} parent=1 // loop_body
      %s22 = ssub.s32 %s17, 1
      %s23 = ssub.s32 %s17, 2
      %s30 = sadd.s32 1, %s25
      %p31 = scmp.ge.s32.totalorder %s30, 1
      %s32 = scalar_select %p31, 0, %s30
      %s33 = sadd.s32 1, %s24
      %s34 = scalar_select %p31, %s33, %s24
      %p35 = scmp.ge.s32.totalorder %s34, 2
      %s36 = scalar_select %p35, 0, %s34
      %s37 = ssub.s32 %s24, %s36
      %s38 = ssub.s32 %s25, %s32
      %s39 = sor.u32 %s37, %s38
      %p40 = scmp.eq.s32.totalorder %s39, 0
      %s42 = sadd.s32 %s41, 1
      %s43 = scalar_select %p40, %s41, %s42
      %p46 = pneg %p40
      %p47 = scmp.eq.s32.totalorder %s17, 1
      %p48 = por %p46, %p47
      %p49 = scmp.ne.s32.totalorder %s41, %s44
      %p50 = scmp.eq.s32.totalorder %s17, 0
      %p51 = por %p49, %p50
      %p52 = scmp.ne.s32.totalorder %s41, %s44
      %p53 = scmp.eq.s32.totalorder %s22, 1
      %p54 = por %p52, %p53
      %p55 = scmp.ne.s32.totalorder %s44, %s45
      %p56 = scmp.eq.s32.totalorder %s22, 0
      %p57 = por %p55, %p56
      %p58 = scmp.ne.s32.totalorder %s44, %s45
      %p59 = scmp.eq.s32.totalorder %s23, 1
      %p60 = por %p58, %p59
      %p62 = scmp.ne.s32.totalorder %s45, %s61
      %p63 = scmp.eq.s32.totalorder %s23, 0
      %p64 = por %p62, %p63
      %s65 = ssub.s32 %s25, %s32
      %p66 = scmp.eq.s32.totalorder %s65, 0
      %s68 = sadd.s32 %s67, 1
      %s69 = scalar_select %p66, %s67, %s68
      %p72 = pneg %p66
      %p73 = scmp.eq.s32.totalorder %s17, 1
      %p74 = por %p72, %p73
      %p75 = scmp.ne.s32.totalorder %s67, %s70
      %p76 = scmp.eq.s32.totalorder %s17, 0
      %p77 = por %p75, %p76
      %p78 = scmp.ne.s32.totalorder %s67, %s70
      %p79 = scmp.eq.s32.totalorder %s22, 1
      %p80 = por %p78, %p79
      %p81 = scmp.ne.s32.totalorder %s70, %s71
      %p82 = scmp.eq.s32.totalorder %s22, 0
      %p83 = por %p81, %p82
      %p84 = scmp.ne.s32.totalorder %s70, %s71
      %p85 = scmp.eq.s32.totalorder %s23, 1
      %p86 = por %p84, %p85
      %p88 = scmp.ne.s32.totalorder %s71, %s87
      %p89 = scmp.eq.s32.totalorder %s23, 0
      %p90 = por %p88, %p89
      %s92 = sadd.s32 %s91, 1
      %p95 = scmp.eq.s32.totalorder %s17, 1
      %p96 = scmp.ne.s32.totalorder %s91, %s93
      %p97 = scmp.eq.s32.totalorder %s17, 0
      %p98 = por %p96, %p97
      %p99 = scmp.ne.s32.totalorder %s91, %s93
      %p100 = scmp.eq.s32.totalorder %s22, 1
      %p101 = por %p99, %p100
      %p102 = scmp.ne.s32.totalorder %s93, %s94
      %p103 = scmp.eq.s32.totalorder %s22, 0
      %p104 = por %p102, %p103
      %p105 = scmp.ne.s32.totalorder %s93, %s94
      %p106 = scmp.eq.s32.totalorder %s23, 1
      %p107 = por %p105, %p106
      %p109 = scmp.ne.s32.totalorder %s94, %s108
      %p110 = scmp.eq.s32.totalorder %s23, 0
      %p111 = por %p109, %p110
      %s113 = sadd.s32 %s112, 1
      %p116 = scmp.eq.s32.totalorder %s17, 1
      %p117 = scmp.ne.s32.totalorder %s112, %s114
      %p118 = scmp.eq.s32.totalorder %s17, 0
      %p119 = por %p117, %p118
      %p120 = scmp.ne.s32.totalorder %s112, %s114
      %p121 = scmp.eq.s32.totalorder %s22, 1
      %p122 = por %p120, %p121
      %p123 = scmp.ne.s32.totalorder %s114, %s115
      %p124 = scmp.eq.s32.totalorder %s22, 0
      %p125 = por %p123, %p124
      %p126 = scmp.ne.s32.totalorder %s114, %s115
      %p127 = scmp.eq.s32.totalorder %s23, 1
      %p128 = por %p126, %p127
      %p130 = scmp.ne.s32.totalorder %s115, %s129
      %p131 = scmp.eq.s32.totalorder %s23, 0
      %p132 = por %p130, %p131
      %s134 = sadd.s32 %s133, 1
      %p137 = scmp.eq.s32.totalorder %s17, 1
      %p138 = scmp.ne.s32.totalorder %s133, %s135
      %p139 = scmp.eq.s32.totalorder %s17, 0
      %p140 = por %p138, %p139
      %p141 = scmp.ne.s32.totalorder %s133, %s135
      %p142 = scmp.eq.s32.totalorder %s22, 1
      %p143 = por %p141, %p142
      %p144 = scmp.ne.s32.totalorder %s135, %s136
      %p145 = scmp.eq.s32.totalorder %s22, 0
      %p146 = por %p144, %p145
      %p147 = scmp.ne.s32.totalorder %s135, %s136
      %p148 = scmp.eq.s32.totalorder %s23, 1
      %p149 = por %p147, %p148
      %p151 = scmp.ne.s32.totalorder %s136, %s150
      %p152 = scmp.eq.s32.totalorder %s23, 0
      %p153 = por %p151, %p152
      %s155 = sadd.s32 %s154, 1
      %p158 = scmp.eq.s32.totalorder %s17, 1
      %p159 = scmp.ne.s32.totalorder %s154, %s156
      %p160 = scmp.eq.s32.totalorder %s17, 0
      %p161 = por %p159, %p160
      %p162 = scmp.ne.s32.totalorder %s154, %s156
      %p163 = scmp.eq.s32.totalorder %s22, 1
      %p164 = por %p162, %p163
      %p165 = scmp.ne.s32.totalorder %s156, %s157
      %p166 = scmp.eq.s32.totalorder %s22, 0
      %p167 = por %p165, %p166
      %p168 = scmp.ne.s32.totalorder %s156, %s157
      %p169 = scmp.eq.s32.totalorder %s23, 1
      %p170 = por %p168, %p169
      %p172 = scmp.ne.s32.totalorder %s157, %s171
      %p173 = scmp.eq.s32.totalorder %s23, 0
      %p174 = por %p172, %p173
      %s176 = sadd.s32 %s175, 1
      %p179 = scmp.eq.s32.totalorder %s17, 1
      %p180 = scmp.ne.s32.totalorder %s175, %s177
      %p181 = scmp.eq.s32.totalorder %s17, 0
      %p182 = por %p180, %p181
      %p183 = scmp.ne.s32.totalorder %s175, %s177
      %p184 = scmp.eq.s32.totalorder %s22, 1
      %p185 = por %p183, %p184
      %p186 = scmp.ne.s32.totalorder %s177, %s178
      %p187 = scmp.eq.s32.totalorder %s22, 0
      %p188 = por %p186, %p187
      %p189 = scmp.ne.s32.totalorder %s177, %s178
      %p190 = scmp.eq.s32.totalorder %s23, 1
      %p191 = por %p189, %p190
      %p193 = scmp.ne.s32.totalorder %s178, %s192
      %p194 = scmp.eq.s32.totalorder %s23, 0
      %p195 = por %p193, %p194
      %s197 = sadd.s32 %s196, 1
      %p200 = scmp.eq.s32.totalorder %s17, 1
      %p201 = scmp.ne.s32.totalorder %s196, %s198
      %p202 = scmp.eq.s32.totalorder %s17, 0
      %p203 = por %p201, %p202
      %p204 = scmp.ne.s32.totalorder %s196, %s198
      %p205 = scmp.eq.s32.totalorder %s22, 1
      %p206 = por %p204, %p205
      %p207 = scmp.ne.s32.totalorder %s198, %s199
      %p208 = scmp.eq.s32.totalorder %s22, 0
      %p209 = por %p207, %p208
      %p210 = scmp.ne.s32.totalorder %s198, %s199
      %p211 = scmp.eq.s32.totalorder %s23, 1
      %p212 = por %p210, %p211
      %p214 = scmp.ne.s32.totalorder %s199, %s213
      %p215 = scmp.eq.s32.totalorder %s23, 0
      %p216 = por %p214, %p215
      %s217 = ssub.s32 %s24, %s36
      %s218 = ssub.s32 %s25, %s32
      %s219 = sor.u32 %s217, %s218
      %p220 = scmp.eq.s32.totalorder %s219, 0
      %s222 = sadd.s32 %s221, 1
      %s223 = scalar_select %p220, %s221, %s222
      %p226 = pneg %p220
      %p227 = scmp.eq.s32.totalorder %s17, 1
      %p228 = por %p226, %p227
      %p229 = scmp.ne.s32.totalorder %s221, %s224
      %p230 = scmp.eq.s32.totalorder %s17, 0
      %p231 = por %p229, %p230
      %p232 = scmp.ne.s32.totalorder %s221, %s224
      %p233 = scmp.eq.s32.totalorder %s22, 1
      %p234 = por %p232, %p233
      %p235 = scmp.ne.s32.totalorder %s224, %s225
      %p236 = scmp.eq.s32.totalorder %s22, 0
      %p237 = por %p235, %p236
      %p238 = scmp.ne.s32.totalorder %s224, %s225
      %p239 = scmp.eq.s32.totalorder %s23, 1
      %p240 = por %p238, %p239
      %p242 = scmp.ne.s32.totalorder %s225, %s241
      %p243 = scmp.eq.s32.totalorder %s23, 0
      %p244 = por %p242, %p243
      %p245 = scmp.le.s32.totalorder 1, %s17
      %p246 = scmp.lt.s32.totalorder %s17, 3
      %p247 = pnand %p245, %p246
      %p248 = pneg %p247
      // Predicated region
      $region9: #{tpu_custom_call.1} parent=5 // pred_check
        _
      $region10: #{tpu_custom_call.1} parent=5 // pred_check_branch
        %250 = sbr.rel (%p247) target = $region12
      $region11: #{tpu_custom_call.1} parent=5 // pred_region
        %s251 = ssub.s32 %s17, 1
        // Predicated region
        $region13: #{tpu_custom_call.1} parent=11 // pred_check
          %p252 = pneg %p83
        $region14: #{tpu_custom_call.1} parent=11 // pred_check_branch
          %254 = sbr.rel (%p252) target = $region16
        $region15: #{tpu_custom_call.1} parent=11 // pred_region
          %s255 = smul.u32 4, %s27
          %p256 = scmp.lt.s32.totalorder %s255, 3
          %s257 = scalar_select %p256, %s255, 3
          %s258 = scalar_lea.vmem %s1, %s257
          %s259 = smul.u32 4, %s27
        $region16: #{tpu_custom_call.1} parent=11 // pred_fallthru
          _
        // Predicated region
        $region17: #{tpu_custom_call.1} parent=11 // pred_check
          %p260 = pneg %p104
        $region18: #{tpu_custom_call.1} parent=11 // pred_check_branch
          %262 = sbr.rel (%p260) target = $region20
        $region19: #{tpu_custom_call.1} parent=11 // pred_region
          _
        $region20: #{tpu_custom_call.1} parent=11 // pred_fallthru
          _
        // Predicated region
        $region21: #{tpu_custom_call.1} parent=11 // pred_check
          %p263 = pneg %p125
        $region22: #{tpu_custom_call.1} parent=11 // pred_check_branch
          %265 = sbr.rel (%p263) target = $region24
        $region23: #{tpu_custom_call.1} parent=11 // pred_region
          _
        $region24: #{tpu_custom_call.1} parent=11 // pred_fallthru
          _
        // Predicated region
        $region25: #{tpu_custom_call.1} parent=11 // pred_check
          %p266 = pneg %p146
        $region26: #{tpu_custom_call.1} parent=11 // pred_check_branch
          %268 = sbr.rel (%p266) target = $region28
        $region27: #{tpu_custom_call.1} parent=11 // pred_region
          _
        $region28: #{tpu_custom_call.1} parent=11 // pred_fallthru
          _
        // Predicated region
        $region29: #{tpu_custom_call.1} parent=11 // pred_check
          %p269 = pneg %p167
        $region30: #{tpu_custom_call.1} parent=11 // pred_check_branch
          %271 = sbr.rel (%p269) target = $region32
        $region31: #{tpu_custom_call.1} parent=11 // pred_region
          _
        $region32: #{tpu_custom_call.1} parent=11 // pred_fallthru
          _
        // Predicated region
        $region33: #{tpu_custom_call.1} parent=11 // pred_check
          %p272 = pneg %p188
        $region34: #{tpu_custom_call.1} parent=11 // pred_check_branch
          %274 = sbr.rel (%p272) target = $region36
        $region35: #{tpu_custom_call.1} parent=11 // pred_region
          _
        $region36: #{tpu_custom_call.1} parent=11 // pred_fallthru
          _
        // Predicated region
        $region37: #{tpu_custom_call.1} parent=11 // pred_check
          %p275 = pneg %p209
        $region38: #{tpu_custom_call.1} parent=11 // pred_check_branch
          %277 = sbr.rel (%p275) target = $region40
        $region39: #{tpu_custom_call.1} parent=11 // pred_region
          _
        $region40: #{tpu_custom_call.1} parent=11 // pred_fallthru
          _
      $region12: #{tpu_custom_call.1} parent=5 // pred_fallthru
        _
      %p278 = scmp.lt.s32.totalorder %s17, 2
      // Predicated region
      $region41: #{tpu_custom_call.1} parent=5 // pred_check
        %p279 = pneg %p278
      $region42: #{tpu_custom_call.1} parent=5 // pred_check_branch
        %281 = sbr.rel (%p279) target = $region44
      $region43: #{tpu_custom_call.1} parent=5 // pred_region
        // Predicated region
        $region45: #{tpu_custom_call.1} parent=43 // pred_check
          %p282 = pneg %p51
        $region46: #{tpu_custom_call.1} parent=43 // pred_check_branch
          %284 = sbr.rel (%p282) target = $region48
        $region47: #{tpu_custom_call.1} parent=43 // pred_region
          %s285 = smul.u32 4, %s25
          %p286 = scmp.lt.s32.totalorder %s24, 1
          %s287 = scalar_select %p286, %s24, 1
          %p288 = scmp.lt.s32.totalorder %s285, 3
          %s289 = scalar_select %p288, %s285, 3
          %s290 = smul.addr %s287, 4
          %s291 = sadd.s32 %s289, %s290
          %s292 = smul.addr %s291, 4
          %s293 = scalar_lea.vmem %s0, %s292
          %s294 = smul.u32 4, %s25
        $region48: #{tpu_custom_call.1} parent=43 // pred_fallthru
          _
      $region44: #{tpu_custom_call.1} parent=5 // pred_fallthru
        _
      %p295 = scmp.le.s32.totalorder 1, %s17
      %p296 = scmp.lt.s32.totalorder %s17, 3
      %p297 = pnand %p295, %p296
      %p298 = pneg %p297
      // Predicated region
      $region49: #{tpu_custom_call.1} parent=5 // pred_check
        _
      $region50: #{tpu_custom_call.1} parent=5 // pred_check_branch
        %300 = sbr.rel (%p297) target = $region52
      $region51: #{tpu_custom_call.1} parent=5 // pred_region
        %s301 = ssub.s32 %s17, 1
        %s302 = smul.u32 4, %s27
        %p303 = scmp.lt.s32.totalorder %s26, 1
        %s304 = scalar_select %p303, %s26, 1
        %p305 = scmp.lt.s32.totalorder %s302, 3
        %s306 = scalar_select %p305, %s302, 3
        %s307 = smul.addr %s304, 4
        %s308 = sadd.s32 %s306, %s307
        %s309 = smul.addr %s308, 4
        %s310 = scalar_lea.vmem %s0, %s309
        %p311 = pneg %p57
        %p312 = pneg %p54
        %s313 = smul.u32 4, %s27
        %p314 = scmp.lt.s32.totalorder %s313, 3
        %s315 = scalar_select %p314, %s313, 3
        %s316 = scalar_lea.vmem %s1, %s315
        %p317 = pneg %p83
        %p318 = pneg %p80
        %p319 = pneg %p104
        %p320 = pneg %p101
        %p321 = pneg %p125
        %p322 = pneg %p122
        %p323 = pneg %p146
        %p324 = pneg %p143
        %p325 = pneg %p167
        %p326 = pneg %p164
        %p327 = pneg %p188
        %p328 = pneg %p185
        %p329 = pneg %p209
        %p330 = pneg %p206
        %p331 = pneg %p237
        %p332 = pneg %p234
        %s333 = sand.u32 %s224, 1
        %s334 = scalar_lea.sflag [#allocation3], %s333
        %s335 = sand.u32 %s224, 1
        %s336 = smul.addr %s335, 24
        %s337 = scalar_lea.vmem [#allocation2], %s336
        %s338 = smul.u32 4, %s27
        %p339 = scmp.lt.s32.totalorder %s26, 1
        %s340 = scalar_select %p339, %s26, 1
        %p341 = scmp.lt.s32.totalorder %s338, 3
        %s342 = scalar_select %p341, %s338, 3
        %s343 = smul.addr %s340, 4
        %s344 = sadd.s32 %s342, %s343
        %s345 = smul.addr %s344, 4
        %s346 = scalar_lea.vmem %s0, %s345
        %s347 = smul.u32 4, %s27
        %s348 = smul.u32 4, %s27
        %p349 = scmp.lt.s32.totalorder %s348, 3
        %s350 = scalar_select %p349, %s348, 3
        %s351 = scalar_lea.vmem %s1, %s350
        %s352 = smul.u32 4, %s27
        %s353 = smul.u32 3, %s27
        %v354 = vld [vmem:[%s346] sm:$0xff]
        %v355 = vld [vmem:[%s346 + $0x8] sm:$0xff]
        %v356 = vld [vmem:[%s2] sm:$0xff]
        %v357 = vld [vmem:[%s2 + $0x8] sm:$0xff]
        %359 = vset.pattern.permute.xlu0 0
        %360 = vperm.xlu0 %359, %v356
        %v361 = vpop.permute.xlu0 %360
        %364 = vset.pattern.permute.xlu0 0
        %365 = vperm.xlu0 %364, %v357
        %v366 = vpop.permute.xlu0 %365
        %v370 = vlaneseq
        %v371 = vshrl.u32 %v370, 7
        %v372 = vsub.s32 0, %v371
        %v373 = vrot.slane %v354, %v372
        %v374 = vlaneseq
        %v375 = vshrl.u32 %v374, 7
        %v376 = vsub.s32 4, %v375
        %v377 = vrot.slane %v354, %v376
        %v378 = vlaneseq
        %v379 = vshrl.u32 %v378, 7
        %v380 = vsub.s32 0, %v379
        %v381 = vrot.slane %v355, %v380
        %v382 = vlaneseq
        %v383 = vshrl.u32 %v382, 7
        %v384 = vsub.s32 4, %v383
        %v385 = vrot.slane %v355, %v384
        %v390 = vlaneseq
        %v391 = vshrl.u32 %v390, 7
        %v392 = vsub.s32 0, %v391
        %v393 = vrot.slane %v373, %v392
        %v394 = vlaneseq
        %v395 = vshrl.u32 %v394, 7
        %v396 = vsub.s32 0, %v395
        %v397 = vrot.slane %v377, %v396
        %v398 = vlaneseq
        %v399 = vshrl.u32 %v398, 7
        %v400 = vsub.s32 0, %v399
        %v401 = vrot.slane %v381, %v400
        %v402 = vlaneseq
        %v403 = vshrl.u32 %v402, 7
        %v404 = vsub.s32 0, %v403
        %v405 = vrot.slane %v385, %v404
        %v406 = vmul.f32 %v361, %v393
        %v407 = vmul.f32 %v361, %v397
        %v408 = vmul.f32 %v361, %v401
        %v409 = vmul.f32 %v361, %v405
        %v410 = vmul.f32 %v366, %v393
        %v411 = vmul.f32 %v366, %v397
        %v412 = vmul.f32 %v366, %v401
        %v413 = vmul.f32 %v366, %v405
        %414 = vset.pattern.permute.xlu0 1
        %415 = vperm.xlu0 %414, %v356
        %v416 = vpop.permute.xlu0 %415
        %418 = vset.pattern.permute.xlu0 1
        %419 = vperm.xlu0 %418, %v357
        %v420 = vpop.permute.xlu0 %419
        %v422 = vlaneseq
        %v423 = vshrl.u32 %v422, 7
        %v424 = vsub.s32 1, %v423
        %v425 = vrot.slane %v354, %v424
        %v426 = vlaneseq
        %v427 = vshrl.u32 %v426, 7
        %v428 = vsub.s32 5, %v427
        %v429 = vrot.slane %v354, %v428
        %v430 = vlaneseq
        %v431 = vshrl.u32 %v430, 7
        %v432 = vsub.s32 1, %v431
        %v433 = vrot.slane %v355, %v432
        %v434 = vlaneseq
        %v435 = vshrl.u32 %v434, 7
        %v436 = vsub.s32 5, %v435
        %v437 = vrot.slane %v355, %v436
        %v442 = vlaneseq
        %v443 = vshrl.u32 %v442, 7
        %v444 = vsub.s32 1, %v443
        %v445 = vrot.slane %v425, %v444
        %v446 = vlaneseq
        %v447 = vshrl.u32 %v446, 7
        %v448 = vsub.s32 1, %v447
        %v449 = vrot.slane %v429, %v448
        %v450 = vlaneseq
        %v451 = vshrl.u32 %v450, 7
        %v452 = vsub.s32 1, %v451
        %v453 = vrot.slane %v433, %v452
        %v454 = vlaneseq
        %v455 = vshrl.u32 %v454, 7
        %v456 = vsub.s32 1, %v455
        %v457 = vrot.slane %v437, %v456
        %v458 = vmul.f32 %v416, %v445
        %v459 = vmul.f32 %v416, %v449
        %v460 = vmul.f32 %v416, %v453
        %v461 = vmul.f32 %v416, %v457
        %v462 = vmul.f32 %v420, %v445
        %v463 = vmul.f32 %v420, %v449
        %v464 = vmul.f32 %v420, %v453
        %v465 = vmul.f32 %v420, %v457
        %v466 = vadd.f32 %v406, %v458
        %v467 = vadd.f32 %v407, %v459
        %v468 = vadd.f32 %v408, %v460
        %v469 = vadd.f32 %v409, %v461
        %v470 = vadd.f32 %v410, %v462
        %v471 = vadd.f32 %v411, %v463
        %v472 = vadd.f32 %v412, %v464
        %v473 = vadd.f32 %v413, %v465
        %474 = vset.pattern.permute.xlu0 2
        %475 = vperm.xlu0 %474, %v356
        %v476 = vpop.permute.xlu0 %475
        %478 = vset.pattern.permute.xlu0 2
        %479 = vperm.xlu0 %478, %v357
        %v480 = vpop.permute.xlu0 %479
        %v482 = vlaneseq
        %v483 = vshrl.u32 %v482, 7
        %v484 = vsub.s32 2, %v483
        %v485 = vrot.slane %v354, %v484
        %v486 = vlaneseq
        %v487 = vshrl.u32 %v486, 7
        %v488 = vsub.s32 6, %v487
        %v489 = vrot.slane %v354, %v488
        %v490 = vlaneseq
        %v491 = vshrl.u32 %v490, 7
        %v492 = vsub.s32 2, %v491
        %v493 = vrot.slane %v355, %v492
        %v494 = vlaneseq
        %v495 = vshrl.u32 %v494, 7
        %v496 = vsub.s32 6, %v495
        %v497 = vrot.slane %v355, %v496
        %v502 = vlaneseq
        %v503 = vshrl.u32 %v502, 7
        %v504 = vsub.s32 2, %v503
        %v505 = vrot.slane %v485, %v504
        %v506 = vlaneseq
        %v507 = vshrl.u32 %v506, 7
        %v508 = vsub.s32 2, %v507
        %v509 = vrot.slane %v489, %v508
        %v510 = vlaneseq
        %v511 = vshrl.u32 %v510, 7
        %v512 = vsub.s32 2, %v511
        %v513 = vrot.slane %v493, %v512
        %v514 = vlaneseq
        %v515 = vshrl.u32 %v514, 7
        %v516 = vsub.s32 2, %v515
        %v517 = vrot.slane %v497, %v516
        %v518 = vmul.f32 %v476, %v505
        %v519 = vmul.f32 %v476, %v509
        %v520 = vmul.f32 %v476, %v513
        %v521 = vmul.f32 %v476, %v517
        %v522 = vmul.f32 %v480, %v505
        %v523 = vmul.f32 %v480, %v509
        %v524 = vmul.f32 %v480, %v513
        %v525 = vmul.f32 %v480, %v517
        %v526 = vadd.f32 %v466, %v518
        %v527 = vadd.f32 %v467, %v519
        %v528 = vadd.f32 %v468, %v520
        %v529 = vadd.f32 %v469, %v521
        %v530 = vadd.f32 %v470, %v522
        %v531 = vadd.f32 %v471, %v523
        %v532 = vadd.f32 %v472, %v524
        %v533 = vadd.f32 %v473, %v525
        %534 = vset.pattern.permute.xlu0 3
        %535 = vperm.xlu0 %534, %v356
        %v536 = vpop.permute.xlu0 %535
        %538 = vset.pattern.permute.xlu0 3
        %539 = vperm.xlu0 %538, %v357
        %v540 = vpop.permute.xlu0 %539
        %v542 = vlaneseq
        %v543 = vshrl.u32 %v542, 7
        %v544 = vsub.s32 3, %v543
        %v545 = vrot.slane %v354, %v544
        %v546 = vlaneseq
        %v547 = vshrl.u32 %v546, 7
        %v548 = vsub.s32 7, %v547
        %v549 = vrot.slane %v354, %v548
        %v550 = vlaneseq
        %v551 = vshrl.u32 %v550, 7
        %v552 = vsub.s32 3, %v551
        %v553 = vrot.slane %v355, %v552
        %v554 = vlaneseq
        %v555 = vshrl.u32 %v554, 7
        %v556 = vsub.s32 7, %v555
        %v557 = vrot.slane %v355, %v556
        %v562 = vlaneseq
        %v563 = vshrl.u32 %v562, 7
        %v564 = vsub.s32 3, %v563
        %v565 = vrot.slane %v545, %v564
        %v566 = vlaneseq
        %v567 = vshrl.u32 %v566, 7
        %v568 = vsub.s32 3, %v567
        %v569 = vrot.slane %v549, %v568
        %v570 = vlaneseq
        %v571 = vshrl.u32 %v570, 7
        %v572 = vsub.s32 3, %v571
        %v573 = vrot.slane %v553, %v572
        %v574 = vlaneseq
        %v575 = vshrl.u32 %v574, 7
        %v576 = vsub.s32 3, %v575
        %v577 = vrot.slane %v557, %v576
        %v578 = vmul.f32 %v536, %v565
        %v579 = vmul.f32 %v536, %v569
        %v580 = vmul.f32 %v536, %v573
        %v581 = vmul.f32 %v536, %v577
        %v582 = vmul.f32 %v540, %v565
        %v583 = vmul.f32 %v540, %v569
        %v584 = vmul.f32 %v540, %v573
        %v585 = vmul.f32 %v540, %v577
        %v586 = vadd.f32 %v526, %v578
        %v587 = vadd.f32 %v527, %v579
        %v588 = vadd.f32 %v528, %v580
        %v589 = vadd.f32 %v529, %v581
        %v590 = vadd.f32 %v530, %v582
        %v591 = vadd.f32 %v531, %v583
        %v592 = vadd.f32 %v532, %v584
        %v593 = vadd.f32 %v533, %v585
        %v594 = vld [vmem:[%s3] sm:$0xff]
        %v595 = vld [vmem:[%s3 + $0x8] sm:$0xff]
        %597 = vset.pattern.permute.xlu0 0
        %598 = vperm.xlu0 %597, %v594
        %v599 = vpop.permute.xlu0 %598
        %602 = vset.pattern.permute.xlu0 0
        %603 = vperm.xlu0 %602, %v595
        %v604 = vpop.permute.xlu0 %603
        %v606 = vadd.f32 %v586, %v599
        %v607 = vadd.f32 %v587, %v599
        %v608 = vadd.f32 %v588, %v599
        %v609 = vadd.f32 %v589, %v599
        %v610 = vadd.f32 %v590, %v604
        %v611 = vadd.f32 %v591, %v604
        %v612 = vadd.f32 %v592, %v604
        %v613 = vadd.f32 %v593, %v604
        %vm614 = vcmp.gt.f32.partialorder %v606, 0.0
        %vm615 = vcmp.gt.f32.partialorder %v607, 0.0
        %vm616 = vcmp.gt.f32.partialorder %v608, 0.0
        %vm617 = vcmp.gt.f32.partialorder %v609, 0.0
        %v618 = vmul.f32 %v606, 0.01
        %v619 = vmul.f32 %v607, 0.01
        %v620 = vmul.f32 %v608, 0.01
        %v621 = vmul.f32 %v609, 0.01
        %v622 = vsel %vm614, %v606, %v618
        %v623 = vsel %vm615, %v607, %v619
        %v624 = vsel %vm616, %v608, %v620
        %v625 = vsel %vm617, %v609, %v621
        %v626 = vld [vmem:[%s351] sm:$0xf]
        %v628 = vlaneseq
        %v629 = vshrl.u32 %v628, 7
        %v630 = vsub.s32 0, %v629
        %v631 = vrot.slane %v626, %v630
        %v632 = vlaneseq
        %v633 = vshrl.u32 %v632, 7
        %v634 = vsub.s32 1, %v633
        %v635 = vrot.slane %v626, %v634
        %v636 = vlaneseq
        %v637 = vshrl.u32 %v636, 7
        %v638 = vsub.s32 2, %v637
        %v639 = vrot.slane %v626, %v638
        %v640 = vlaneseq
        %v641 = vshrl.u32 %v640, 7
        %v642 = vsub.s32 3, %v641
        %v643 = vrot.slane %v626, %v642
        %v648 = vmul.f32 %v622, %v631
        %v649 = vmul.f32 %v623, %v635
        %v650 = vmul.f32 %v624, %v639
        %v651 = vmul.f32 %v625, %v643
        %v652 = vld [vmem:[%s4] sm:$0xf]
        %654 = vset.pattern.permute.xlu0 0
        %655 = vperm.xlu0 %654, %v652
        %v656 = vpop.permute.xlu0 %655
        %v658 = vmul.f32 %v656, %v648
        %v659 = vmul.f32 %v656, %v649
        %v660 = vmul.f32 %v656, %v650
        %s661 = scalar_lea.vmem %s4, 4
        %v662 = vld [vmem:[%s661] sm:$0xf]
        %664 = vset.pattern.permute.xlu0 0
        %665 = vperm.xlu0 %664, %v662
        %v666 = vpop.permute.xlu0 %665
        %v668 = vmul.f32 %v666, %v648
        %v669 = vmul.f32 %v666, %v649
        %v670 = vmul.f32 %v666, %v650
        %v671 = vmul.f32 %v666, %v651
        %676 = vrot.lane.b32.xlu0 %v668, 127
        %v677 = vpop.permute.xlu0 %676
        %678 = vrot.lane.b32.xlu0 %v669, 127
        %v679 = vpop.permute.xlu0 %678
        %680 = vrot.lane.b32.xlu0 %v670, 127
        %v681 = vpop.permute.xlu0 %680
        %682 = vrot.lane.b32.xlu0 %v671, 127
        %v683 = vpop.permute.xlu0 %682
        %vm684 = vcmask 1039360
        %v685 = vsel %vm684, %v677, %v679
        %v686 = vsel %vm684, %v679, %v681
        %v687 = vsel %vm684, %v681, %v683
        %v691 = vadd.f32 %v658, %v685
        %v692 = vadd.f32 %v659, %v686
        %v693 = vadd.f32 %v660, %v687
        %s694 = scalar_lea.vmem %s4, 8
        %v695 = vld [vmem:[%s694] sm:$0xf]
        %697 = vset.pattern.permute.xlu0 0
        %698 = vperm.xlu0 %697, %v695
        %v699 = vpop.permute.xlu0 %698
        %v701 = vmul.f32 %v699, %v648
        %v702 = vmul.f32 %v699, %v649
        %v703 = vmul.f32 %v699, %v650
        %v704 = vmul.f32 %v699, %v651
        %709 = vrot.lane.b32.xlu0 %v701, 126
        %v710 = vpop.permute.xlu0 %709
        %711 = vrot.lane.b32.xlu0 %v702, 126
        %v712 = vpop.permute.xlu0 %711
        %713 = vrot.lane.b32.xlu0 %v703, 126
        %v714 = vpop.permute.xlu0 %713
        %715 = vrot.lane.b32.xlu0 %v704, 126
        %v716 = vpop.permute.xlu0 %715
        %vm717 = vcmask 1031168
        %v718 = vsel %vm717, %v710, %v712
        %v719 = vsel %vm717, %v712, %v714
        %v720 = vsel %vm717, %v714, %v716
        %v724 = vadd.f32 %v691, %v718
        %v725 = vadd.f32 %v692, %v719
        %v726 = vadd.f32 %v693, %v720
        %s727 = scalar_lea.vmem %s4, 12
        %v728 = vld [vmem:[%s727] sm:$0xf]
        %730 = vset.pattern.permute.xlu0 0
        %731 = vperm.xlu0 %730, %v728
        %v732 = vpop.permute.xlu0 %731
        %v734 = vmul.f32 %v732, %v648
        %v735 = vmul.f32 %v732, %v649
        %v736 = vmul.f32 %v732, %v650
        %v737 = vmul.f32 %v732, %v651
        %742 = vrot.lane.b32.xlu0 %v734, 110
        %v743 = vpop.permute.xlu0 %742
        %744 = vrot.lane.b32.xlu0 %v735, 110
        %v745 = vpop.permute.xlu0 %744
        %746 = vrot.lane.b32.xlu0 %v736, 110
        %v747 = vpop.permute.xlu0 %746
        %748 = vrot.lane.b32.xlu0 %v737, 110
        %v749 = vpop.permute.xlu0 %748
        %vm750 = vcmask 900096
        %v751 = vsel %vm750, %v743, %v745
        %v752 = vsel %vm750, %v745, %v747
        %v753 = vsel %vm750, %v747, %v749
        %v757 = vadd.f32 %v724, %v751
        %v758 = vadd.f32 %v725, %v752
        %v759 = vadd.f32 %v726, %v753
        %s760 = scalar_lea.vmem %s4, 16
        %v761 = vld [vmem:[%s760] sm:$0xf]
        %763 = vset.pattern.permute.xlu0 0
        %764 = vperm.xlu0 %763, %v761
        %v765 = vpop.permute.xlu0 %764
        %v767 = vmul.f32 %v765, %v648
        %v768 = vmul.f32 %v765, %v649
        %v769 = vmul.f32 %v765, %v650
        %v770 = vmul.f32 %v765, %v651
        %775 = vrot.lane.b32.xlu0 %v767, 109
        %v776 = vpop.permute.xlu0 %775
        %777 = vrot.lane.b32.xlu0 %v768, 109
        %v778 = vpop.permute.xlu0 %777
        %779 = vrot.lane.b32.xlu0 %v769, 109
        %v780 = vpop.permute.xlu0 %779
        %781 = vrot.lane.b32.xlu0 %v770, 109
        %v782 = vpop.permute.xlu0 %781
        %vm783 = vcmask 891904
        %v784 = vsel %vm783, %v776, %v778
        %v785 = vsel %vm783, %v778, %v780
        %v786 = vsel %vm783, %v780, %v782
        %v790 = vadd.f32 %v757, %v784
        %v791 = vadd.f32 %v758, %v785
        %v792 = vadd.f32 %v759, %v786
        %s793 = scalar_lea.vmem %s4, 20
        %v794 = vld [vmem:[%s793] sm:$0xf]
        %796 = vset.pattern.permute.xlu0 0
        %797 = vperm.xlu0 %796, %v794
        %v798 = vpop.permute.xlu0 %797
        %v800 = vmul.f32 %v798, %v648
        %v801 = vmul.f32 %v798, %v649
        %v802 = vmul.f32 %v798, %v650
        %v803 = vmul.f32 %v798, %v651
        %808 = vrot.lane.b32.xlu0 %v800, 108
        %v809 = vpop.permute.xlu0 %808
        %810 = vrot.lane.b32.xlu0 %v801, 108
        %v811 = vpop.permute.xlu0 %810
        %812 = vrot.lane.b32.xlu0 %v802, 108
        %v813 = vpop.permute.xlu0 %812
        %814 = vrot.lane.b32.xlu0 %v803, 108
        %v815 = vpop.permute.xlu0 %814
        %vm816 = vcmask 883712
        %v817 = vsel %vm816, %v809, %v811
        %v818 = vsel %vm816, %v811, %v813
        %v819 = vsel %vm816, %v813, %v815
        %v823 = vadd.f32 %v790, %v817
        %v824 = vadd.f32 %v791, %v818
        %v825 = vadd.f32 %v792, %v819
        %s826 = scalar_lea.vmem %s4, 24
        %v827 = vld [vmem:[%s826] sm:$0xf]
        %829 = vset.pattern.permute.xlu0 0
        %830 = vperm.xlu0 %829, %v827
        %v831 = vpop.permute.xlu0 %830
        %v833 = vmul.f32 %v831, %v648
        %v834 = vmul.f32 %v831, %v649
        %v835 = vmul.f32 %v831, %v650
        %v836 = vmul.f32 %v831, %v651
        %841 = vrot.lane.b32.xlu0 %v833, 92
        %v842 = vpop.permute.xlu0 %841
        %843 = vrot.lane.b32.xlu0 %v834, 92
        %v844 = vpop.permute.xlu0 %843
        %845 = vrot.lane.b32.xlu0 %v835, 92
        %v846 = vpop.permute.xlu0 %845
        %847 = vrot.lane.b32.xlu0 %v836, 92
        %v848 = vpop.permute.xlu0 %847
        %vm849 = vcmask 752640
        %v850 = vsel %vm849, %v842, %v844
        %v851 = vsel %vm849, %v844, %v846
        %v852 = vsel %vm849, %v846, %v848
        %v856 = vadd.f32 %v823, %v850
        %v857 = vadd.f32 %v824, %v851
        %v858 = vadd.f32 %v825, %v852
        %s859 = scalar_lea.vmem %s4, 28
        %v860 = vld [vmem:[%s859] sm:$0xf]
        %862 = vset.pattern.permute.xlu0 0
        %863 = vperm.xlu0 %862, %v860
        %v864 = vpop.permute.xlu0 %863
        %v866 = vmul.f32 %v864, %v648
        %v867 = vmul.f32 %v864, %v649
        %v868 = vmul.f32 %v864, %v650
        %v869 = vmul.f32 %v864, %v651
        %874 = vrot.lane.b32.xlu0 %v866, 91
        %v875 = vpop.permute.xlu0 %874
        %876 = vrot.lane.b32.xlu0 %v867, 91
        %v877 = vpop.permute.xlu0 %876
        %878 = vrot.lane.b32.xlu0 %v868, 91
        %v879 = vpop.permute.xlu0 %878
        %880 = vrot.lane.b32.xlu0 %v869, 91
        %v881 = vpop.permute.xlu0 %880
        %vm882 = vcmask 744448
        %v883 = vsel %vm882, %v875, %v877
        %v884 = vsel %vm882, %v877, %v879
        %v885 = vsel %vm882, %v879, %v881
        %v889 = vadd.f32 %v856, %v883
        %v890 = vadd.f32 %v857, %v884
        %v891 = vadd.f32 %v858, %v885
        %s892 = scalar_lea.vmem %s4, 32
        %v893 = vld [vmem:[%s892] sm:$0xf]
        %895 = vset.pattern.permute.xlu0 0
        %896 = vperm.xlu0 %895, %v893
        %v897 = vpop.permute.xlu0 %896
        %v899 = vmul.f32 %v897, %v648
        %v900 = vmul.f32 %v897, %v649
        %v901 = vmul.f32 %v897, %v650
        %v902 = vmul.f32 %v897, %v651
        %907 = vrot.lane.b32.xlu0 %v899, 90
        %v908 = vpop.permute.xlu0 %907
        %909 = vrot.lane.b32.xlu0 %v900, 90
        %v910 = vpop.permute.xlu0 %909
        %911 = vrot.lane.b32.xlu0 %v901, 90
        %v912 = vpop.permute.xlu0 %911
        %913 = vrot.lane.b32.xlu0 %v902, 90
        %v914 = vpop.permute.xlu0 %913
        %vm915 = vcmask 736256
        %v916 = vsel %vm915, %v908, %v910
        %v917 = vsel %vm915, %v910, %v912
        %v918 = vsel %vm915, %v912, %v914
        %v922 = vadd.f32 %v889, %v916
        %v923 = vadd.f32 %v890, %v917
        %v924 = vadd.f32 %v891, %v918
        %v925 = vld [vmem:[%s5] sm:$0xf]
        %927 = vset.pattern.permute.xlu0 0
        %928 = vperm.xlu0 %927, %v925
        %v929 = vpop.permute.xlu0 %928
        %v931 = vadd.f32 %v922, %v929
        %v932 = vadd.f32 %v923, %v929
        %v933 = vadd.f32 %v924, %v929
        %v934 = vld [vmem:[%s6] sm:$0xff]
        %936 = vset.pattern.permute.xlu0 0
        %937 = vperm.xlu0 %936, %v934
        %v938 = vpop.permute.xlu0 %937
        %v940 = vlaneseq
        %v941 = vshrl.u32 %v940, 7
        %v942 = vsub.s32 0, %v941
        %v943 = vrot.slane %v931, %v942
        %v944 = vlaneseq
        %v945 = vshrl.u32 %v944, 7
        %v946 = vsub.s32 0, %v945
        %v947 = vrot.slane %v932, %v946
        %v948 = vlaneseq
        %v949 = vshrl.u32 %v948, 7
        %v950 = vsub.s32 0, %v949
        %v951 = vrot.slane %v933, %v950
        %v952 = vmul.f32 %v938, %v943
        %v953 = vmul.f32 %v938, %v947
        %v954 = vmul.f32 %v938, %v951
        %955 = vset.pattern.permute.xlu0 1
        %956 = vperm.xlu0 %955, %v934
        %v957 = vpop.permute.xlu0 %956
        %v959 = vlaneseq
        %v960 = vshrl.u32 %v959, 7
        %v961 = vsub.s32 1, %v960
        %v962 = vrot.slane %v931, %v961
        %v963 = vlaneseq
        %v964 = vshrl.u32 %v963, 7
        %v965 = vsub.s32 1, %v964
        %v966 = vrot.slane %v932, %v965
        %v967 = vlaneseq
        %v968 = vshrl.u32 %v967, 7
        %v969 = vsub.s32 1, %v968
        %v970 = vrot.slane %v933, %v969
        %v971 = vmul.f32 %v957, %v962
        %v972 = vmul.f32 %v957, %v966
        %v973 = vmul.f32 %v957, %v970
        %v974 = vadd.f32 %v952, %v971
        %v975 = vadd.f32 %v953, %v972
        %v976 = vadd.f32 %v954, %v973
        %977 = vset.pattern.permute.xlu0 2
        %978 = vperm.xlu0 %977, %v934
        %v979 = vpop.permute.xlu0 %978
        %v981 = vlaneseq
        %v982 = vshrl.u32 %v981, 7
        %v983 = vsub.s32 2, %v982
        %v984 = vrot.slane %v931, %v983
        %v985 = vlaneseq
        %v986 = vshrl.u32 %v985, 7
        %v987 = vsub.s32 2, %v986
        %v988 = vrot.slane %v932, %v987
        %v989 = vlaneseq
        %v990 = vshrl.u32 %v989, 7
        %v991 = vsub.s32 2, %v990
        %v992 = vrot.slane %v933, %v991
        %v993 = vmul.f32 %v979, %v984
        %v994 = vmul.f32 %v979, %v988
        %v995 = vmul.f32 %v979, %v992
        %v996 = vadd.f32 %v974, %v993
        %v997 = vadd.f32 %v975, %v994
        %v998 = vadd.f32 %v976, %v995
        %999 = vset.pattern.permute.xlu0 3
        %1000 = vperm.xlu0 %999, %v934
        %v1001 = vpop.permute.xlu0 %1000
        %v1003 = vlaneseq
        %v1004 = vshrl.u32 %v1003, 7
        %v1005 = vsub.s32 3, %v1004
        %v1006 = vrot.slane %v931, %v1005
        %v1007 = vlaneseq
        %v1008 = vshrl.u32 %v1007, 7
        %v1009 = vsub.s32 3, %v1008
        %v1010 = vrot.slane %v932, %v1009
        %v1011 = vlaneseq
        %v1012 = vshrl.u32 %v1011, 7
        %v1013 = vsub.s32 3, %v1012
        %v1014 = vrot.slane %v933, %v1013
        %v1015 = vmul.f32 %v1001, %v1006
        %v1016 = vmul.f32 %v1001, %v1010
        %v1017 = vmul.f32 %v1001, %v1014
        %v1018 = vadd.f32 %v996, %v1015
        %v1019 = vadd.f32 %v997, %v1016
        %v1020 = vadd.f32 %v998, %v1017
        %v1021 = vld [vmem:[%s7] sm:$0xff]
        %1023 = vset.pattern.permute.xlu0 0
        %1024 = vperm.xlu0 %1023, %v1021
        %v1025 = vpop.permute.xlu0 %1024
        %v1027 = vadd.f32 %v1018, %v1025
        %v1028 = vadd.f32 %v1019, %v1025
        %v1029 = vadd.f32 %v1020, %v1025
        %1034 = vrot.lane.b32.xlu0 %v610, 109
        %v1035 = vpop.permute.xlu0 %1034
        %1036 = vrot.lane.b32.xlu0 %v611, 109
        %v1037 = vpop.permute.xlu0 %1036
        %1038 = vrot.lane.b32.xlu0 %v612, 109
        %v1039 = vpop.permute.xlu0 %1038
        %1040 = vrot.lane.b32.xlu0 %v613, 109
        %v1041 = vpop.permute.xlu0 %1040
        %v1042 = vsel %vm783, %v1035, %v1037
        %v1043 = vsel %vm783, %v1037, %v1039
        %v1044 = vsel %vm783, %v1039, %v1041
        %v1048 = vadd.f32 %v1027, %v1042
        %v1049 = vadd.f32 %v1028, %v1043
        %v1050 = vadd.f32 %v1029, %v1044
        %1051 = vst [vmem:[%s337] sm:$0xff] %v1048
        %1052 = vst [vmem:[%s337 + $0x8] sm:$0xff] %v1049
        %1053 = vst [vmem:[%s337 + $0x10] sm:$0xff] %v1050
        %s1054 = sand.u32 %s224, 1
        %s1055 = scalar_lea.sflag [#allocation3], %s1054
        %s1056 = sand.u32 %s224, 1
        %s1057 = smul.addr %s1056, 24
        %s1058 = scalar_lea.vmem [#allocation2], %s1057
        // Predicated region
        $region53: #{tpu_custom_call.1} parent=51 // pred_check
          %p1059 = pneg %p234
        $region54: #{tpu_custom_call.1} parent=51 // pred_check_branch
          %1061 = sbr.rel (%p1059) target = $region56
        $region55: #{tpu_custom_call.1} parent=51 // pred_region
          %s1062 = smul.u32 3, %s27
          %s1064 = ssub.s32 384, 384
          %1065 = vsyncadd %s1055, %s1064
          %s1066 = smul.addr %s26, 3
          %s1067 = sadd.s32 %s1062, %s1066
          %s1068 = smul.addr %s1067, 128
          %s1069 = scalar_lea.hbm %s8, %s1068
          %s1071 = sshll.u32 %s1058, 4
          %s1072 = int_to_ptr.vmem [resolvable:$true] %s1071
          %1074 = dma.vmem_to_hbm [thread:$0]  %s1072, 384, %s1069, %s1055
        $region56: #{tpu_custom_call.1} parent=51 // pred_fallthru
          _
      $region52: #{tpu_custom_call.1} parent=5 // pred_fallthru
        _
      %p1075 = scmp.le.s32.totalorder 2, %s17
      // Predicated region
      $region57: #{tpu_custom_call.1} parent=5 // pred_check
        %p1076 = pneg %p1075
      $region58: #{tpu_custom_call.1} parent=5 // pred_check_branch
        %1078 = sbr.rel (%p1076) target = $region60
      $region59: #{tpu_custom_call.1} parent=5 // pred_region
        %s1079 = ssub.s32 %s17, 2
        // Predicated region
        $region61: #{tpu_custom_call.1} parent=59 // pred_check
          %p1080 = pneg %p240
        $region62: #{tpu_custom_call.1} parent=59 // pred_check_branch
          %1082 = sbr.rel (%p1080) target = $region64
        $region63: #{tpu_custom_call.1} parent=59 // pred_region
          %s1083 = sand.u32 %s225, 1
          %s1084 = scalar_lea.sflag [#allocation3], %s1083
          %s1085 = sand.u32 %s225, 1
          %s1086 = smul.addr %s1085, 24
          %s1087 = scalar_lea.vmem [#allocation2], %s1086
          %1088 = dma.done %s1084, 384
        $region64: #{tpu_custom_call.1} parent=59 // pred_fallthru
          _
      $region60: #{tpu_custom_call.1} parent=5 // pred_fallthru
        _
    $region6: #{tpu_custom_call.1} parent=1 // loop_footer
      %s21 = sadd.s32 1, %s17
    $region7: #{tpu_custom_call.1} parent=1 // loop_footer_branch
      %16 = sbr.rel target = $region3
    $region8: #{tpu_custom_call.1} parent=1 // loop_exit
      _
    %1089 = vsyncpa [#allocation3], 1
    %s1090 = scalar_lea.sflag [#allocation3], 1
    %1091 = vsyncpa %s1090, 1

</llo_original>
